<compile_context>
chip_gen: v5e
topology: v5e:2x2
jax: 0.10.0
libtpu: 0.0.40
codegen_flags: <defaults>
</compile_context>

<pallas_src>
import jax
import jax.numpy as jnp
from jax.experimental import pallas as pl
from jax.experimental.pallas import tpu as pltpu

LN_EPS = 1e-5  # nn.LayerNorm default


def _fusion_kernel(text_ref, speech_ref, gamma_ref, beta_ref, out_ref):
    """out = text + LayerNorm(speech), reduced over the hidden (lane) axis."""
    s = speech_ref[...].astype(jnp.float32)                    # (TM, H)

    # Two-pass statistics (mean first, then centered sum of squares): stable
    # like torch.nn.LayerNorm, and free of extra HBM traffic since the tile is
    # already resident in VMEM.
    mean = jnp.mean(s, axis=-1, keepdims=True)                 # (TM, 1)
    centered = s - mean
    var = jnp.mean(centered * centered, axis=-1, keepdims=True)
    inv = jax.lax.rsqrt(var + LN_EPS)

    gamma = gamma_ref[...].astype(jnp.float32)                 # (1, H)
    beta = beta_ref[...].astype(jnp.float32)                   # (1, H)
    normed = centered * inv * gamma + beta                     # (TM, H)

    # TODO(synk): Dropout1d(p>0) (training-mode channel dropout) not implemented;
    # the module default dropout_speech=0.0 / eval mode is the identity.
    # Add in f32, downcast once (matches reference numerics for bf16 streams).
    out_ref[...] = (text_ref[...].astype(jnp.float32) + normed).astype(out_ref.dtype)


def _choose_row_tile(n_rows, h, itemsize, n_buffers):
    """Pick a large-but-bounded row tile (a few MiB/block saturates HBM BW)."""
    sublane = max(8, 32 // itemsize)                 # 8 f32 / 16 bf16 / 32 int8
    # Per-row VMEM: 3 streams x n_buffers buffers in native dtype, plus ~4
    # f32-wide temporaries (s, centered, normed, ...) live inside the body.
    bytes_per_row = 3 * n_buffers * h * itemsize + 4 * h * 4
    budget = 24 * 1024 * 1024                        # well under v7x's 64 MiB VMEM
    fit = max(sublane, budget // bytes_per_row)
    want = -(-n_rows // 8)                           # aim for >= 8 grid steps (v7x: 2 TCs)
    tile = min(int(fit), 1024, max(int(want), sublane))
    tile = max(sublane, (tile // sublane) * sublane) # dtype-aware sublane packing
    return int(tile)


def base_fusion(text_embeds, speech_embeds, ln_weight, ln_bias,
                *, normalize_speech=True):
    """JAX wrapper reproducing BaseFusion.forward (eval mode / dropout=0)."""
    assert text_embeds.shape == speech_embeds.shape
    B, T, H = text_embeds.shape
    N = B * T

    if not normalize_speech:
        # No LayerNorm configured -> plain elementwise add; XLA already emits
        # an optimal mem-bound loop for this.
        return text_embeds + speech_embeds

    out_dtype = text_embeds.dtype
    itemsize = max(jnp.dtype(text_embeds.dtype).itemsize,
                   jnp.dtype(speech_embeds.dtype).itemsize)

    n_buffers = 3
    row_tile = _choose_row_tile(N, H, itemsize, n_buffers)
    grid = (pl.cdiv(N, row_tile),)   # ragged last block: OOB rows masked on store

    # No padding / slicing of the big tensors (HBM-bound: copies dominate).
    text2d = text_embeds.reshape(N, H)
    speech2d = speech_embeds.reshape(N, H)
    gamma2d = ln_weight.reshape(1, H)
    beta2d = ln_bias.reshape(1, H)

    # Modest scoped-VMEM claim: ~2x the block working set plus margin, leaving
    # headroom for neighboring XLA fusions.
    ws = row_tile * (3 * n_buffers * H * itemsize + 4 * H * 4)
    vmem_limit = int(min(96 << 20, max(2 * ws + (4 << 20), 16 << 20)))

    cost = pl.CostEstimate(
        flops=8 * N * H,                                   # stats, affine, add
        transcendentals=N,                                 # rsqrt per row
        bytes_accessed=3 * N * H * itemsize + 2 * H * 4,   # 2 reads + 1 write + params
    )

    def build(buffer_count):
        def big_spec():
            if buffer_count is None:
                return pl.BlockSpec((row_tile, H), lambda i: (i, 0))
            return pl.BlockSpec((row_tile, H), lambda i: (i, 0),
                                pipeline_mode=pl.Buffered(buffer_count))

        return pl.pallas_call(
            _fusion_kernel,
            out_shape=jax.ShapeDtypeStruct((N, H), out_dtype),
            grid_spec=pltpu.PrefetchScalarGridSpec(
                num_scalar_prefetch=0,
                grid=grid,
                in_specs=[
                    big_spec(),                                  # text rows
                    big_spec(),                                  # speech rows
                    pl.BlockSpec((1, H), lambda i: (0, 0)),      # LN gamma
                    pl.BlockSpec((1, H), lambda i: (0, 0)),      # LN beta
                ],
                out_specs=big_spec(),
            ),
            compiler_params=pltpu.CompilerParams(
                dimension_semantics=("parallel",),
                vmem_limit_bytes=vmem_limit,
            ),
            cost_estimate=cost,
        )

    try:
        out2d = build(n_buffers)(text2d, speech2d, gamma2d, beta2d)
    except Exception:
        # Graceful fallback if this jax build rejects pipeline_mode=Buffered.
        out2d = build(None)(text2d, speech2d, gamma2d, beta2d)

    return out2d.reshape(B, T, H)


def _reference(text_embeds, speech_embeds, ln_weight, ln_bias):
    s = speech_embeds.astype(jnp.float32)
    mean = jnp.mean(s, axis=-1, keepdims=True)
    var = jnp.mean((s - mean) ** 2, axis=-1, keepdims=True)
    normed = ((s - mean) * jax.lax.rsqrt(var + LN_EPS)
              * ln_weight.astype(jnp.float32) + ln_bias.astype(jnp.float32))
    return (text_embeds.astype(jnp.float32) + normed).astype(text_embeds.dtype)


if __name__ == "__main__":
    key = jax.random.PRNGKey(0)

    # Case 1: exact tiling. Case 2: ragged rows (N=18) and H not a multiple
    # of 128 (exercises the block-dim == full-array-dim path, no padding).
    for (B, T, H) in [(2, 8, 32), (2, 9, 48)]:
        k1, k2, k3, k4, key = jax.random.split(key, 5)
        text_embeds = jax.random.normal(k1, (B, T, H), dtype=jnp.float32)
        speech_embeds = 1.5 * jax.random.normal(k2, (B, T, H), dtype=jnp.float32) + 0.3

        # nn.LayerNorm(hidden_size) params, perturbed so the affine is exercised.
        ln_weight = jnp.ones((H,), jnp.float32) + 0.01 * jax.random.normal(k3, (H,), jnp.float32)
        ln_bias = 0.01 * jax.random.normal(k4, (H,), jnp.float32)

        out = base_fusion(text_embeds, speech_embeds, ln_weight, ln_bias,
                          normalize_speech=True)
        out = jax.block_until_ready(out)

        ref = _reference(text_embeds, speech_embeds, ln_weight, ln_bias)
        assert out.shape == (B, T, H)
        assert jnp.allclose(out, ref, atol=1e-4, rtol=1e-5), f"mismatch at {(B, T, H)}"

    # normalize_speech=False path (module default): plain add.
    plain = base_fusion(text_embeds, speech_embeds, ln_weight, ln_bias,
                        normalize_speech=False)
    plain = jax.block_until_ready(plain)
    assert jnp.allclose(plain, text_embeds + speech_embeds)

    print("KERNEL_OK")
</pallas_src>

<mosaic_0001>
module attributes {stable_mosaic.version = 11 : i64} {
  func.func @_fusion_kernel(%arg0: i32, %arg1: memref<8x32xf32, #tpu.memory_space<vmem>>, %arg2: memref<8x32xf32, #tpu.memory_space<vmem>>, %arg3: memref<1x32xf32, #tpu.memory_space<vmem>>, %arg4: memref<1x32xf32, #tpu.memory_space<vmem>>, %arg5: memref<8x32xf32, #tpu.memory_space<vmem>>) attributes {dimension_semantics = [#tpu.dimension_semantics<parallel>], iteration_bounds = array<i64: 2>, scalar_prefetch = 0 : i64, scratch_operands = 0 : i64, tpu.core_type = #tpu.core_type<tc>, window_params = [{transform_indices = @transform_0, window_bounds = array<i64: 8, 32>}, {transform_indices = @transform_1, window_bounds = array<i64: 8, 32>}, {pipeline_mode = #tpu.pipeline_mode<synchronous>, transform_indices = @transform_2, window_bounds = array<i64: 1, 32>}, {pipeline_mode = #tpu.pipeline_mode<synchronous>, transform_indices = @transform_3, window_bounds = array<i64: 1, 32>}, {transform_indices = @transform_4, window_bounds = array<i64: 8, 32>}]} {
    %c0 = arith.constant 0 : index
    %c0_0 = arith.constant 0 : index
    %0 = vector.load %arg2[%c0, %c0_0] : memref<8x32xf32, #tpu.memory_space<vmem>>, vector<8x32xf32>
    %cst = arith.constant dense<0.000000e+00> : vector<8xf32>
    %1 = vector.multi_reduction <add>, %0, %cst [1] : vector<8x32xf32> to vector<8xf32>
    %2 = vector.shape_cast %1 : vector<8xf32> to vector<8x1xf32>
    %cst_1 = arith.constant 3.200000e+01 : f32
    %3 = vector.broadcast %cst_1 : f32 to vector<8x1xf32>
    %4 = arith.divf %2, %3 : vector<8x1xf32>
    %5 = vector.broadcast %4 : vector<8x1xf32> to vector<8x32xf32>
    %6 = arith.subf %0, %5 : vector<8x32xf32>
    %7 = arith.mulf %6, %6 : vector<8x32xf32>
    %cst_2 = arith.constant dense<0.000000e+00> : vector<8xf32>
    %8 = vector.multi_reduction <add>, %7, %cst_2 [1] : vector<8x32xf32> to vector<8xf32>
    %9 = vector.shape_cast %8 : vector<8xf32> to vector<8x1xf32>
    %cst_3 = arith.constant 3.200000e+01 : f32
    %10 = vector.broadcast %cst_3 : f32 to vector<8x1xf32>
    %11 = arith.divf %9, %10 : vector<8x1xf32>
    %cst_4 = arith.constant 9.99999974E-6 : f32
    %12 = vector.broadcast %cst_4 : f32 to vector<8x1xf32>
    %13 = arith.addf %11, %12 : vector<8x1xf32>
    %14 = math.rsqrt %13 : vector<8x1xf32>
    %c0_5 = arith.constant 0 : index
    %c0_6 = arith.constant 0 : index
    %15 = vector.load %arg3[%c0_5, %c0_6] : memref<1x32xf32, #tpu.memory_space<vmem>>, vector<1x32xf32>
    %c0_7 = arith.constant 0 : index
    %c0_8 = arith.constant 0 : index
    %16 = vector.load %arg4[%c0_7, %c0_8] : memref<1x32xf32, #tpu.memory_space<vmem>>, vector<1x32xf32>
    %17 = vector.broadcast %14 : vector<8x1xf32> to vector<8x32xf32>
    %18 = arith.mulf %6, %17 : vector<8x32xf32>
    %19 = vector.broadcast %15 : vector<1x32xf32> to vector<8x32xf32>
    %20 = arith.mulf %18, %19 : vector<8x32xf32>
    %21 = vector.broadcast %16 : vector<1x32xf32> to vector<8x32xf32>
    %22 = arith.addf %20, %21 : vector<8x32xf32>
    %c0_9 = arith.constant 0 : index
    %c0_10 = arith.constant 0 : index
    %23 = vector.load %arg1[%c0_9, %c0_10] : memref<8x32xf32, #tpu.memory_space<vmem>>, vector<8x32xf32>
    %24 = arith.addf %23, %22 : vector<8x32xf32>
    %c0_11 = arith.constant 0 : index
    %c0_12 = arith.constant 0 : index
    %25 = vector.load %arg5[%c0_11, %c0_12] : memref<8x32xf32, #tpu.memory_space<vmem>>, vector<8x32xf32>
    tpu.vector_store %arg5[%c0_11, %c0_12], %24 {strides = array<i32>} : memref<8x32xf32, #tpu.memory_space<vmem>>, vector<8x32xf32>,
    return
  }
  func.func @transform_0(%arg0: i32) -> (i32, i32) {
    %c0_i32 = arith.constant 0 : i32
    %c0_i32_0 = arith.constant 0 : i32
    return %arg0, %c0_i32 : i32, i32
  }
  func.func @transform_1(%arg0: i32) -> (i32, i32) {
    %c0_i32 = arith.constant 0 : i32
    %c0_i32_0 = arith.constant 0 : i32
    return %arg0, %c0_i32 : i32, i32
  }
  func.func @transform_2(%arg0: i32) -> (i32, i32) {
    %c0_i32 = arith.constant 0 : i32
    %c0_i32_0 = arith.constant 0 : i32
    %c0_i32_1 = arith.constant 0 : i32
    return %c0_i32, %c0_i32_0 : i32, i32
  }
  func.func @transform_3(%arg0: i32) -> (i32, i32) {
    %c0_i32 = arith.constant 0 : i32
    %c0_i32_0 = arith.constant 0 : i32
    %c0_i32_1 = arith.constant 0 : i32
    return %c0_i32, %c0_i32_0 : i32, i32
  }
  func.func @transform_4(%arg0: i32) -> (i32, i32) {
    %c0_i32 = arith.constant 0 : i32
    %c0_i32_0 = arith.constant 0 : i32
    return %arg0, %c0_i32 : i32, i32
  }
}

</mosaic_0001>

<llo_original>
// kernel: tpu_custom_call.1
$region0: #{tpu_custom_call.1}
  #allocation0 [shape = 'u32[]', space=smem, size = 0x4, offset = 0x4, fixed_abs, tag = 'smem constant byte address 0x4 - core index']
  #allocation1 [shape = 'u32[72,128]{1,0:T(1,128)}', space=vmem, size = 0x9000, scoped, tag = 'internal scratch']
  %s0 = inlined_call_operand.hbm [shape: f32[16,32], index: 0, kind: input, shape index: {}]
  %s1 = inlined_call_operand.hbm [shape: f32[16,32], index: 1, kind: input, shape index: {}]
  %s2 = inlined_call_operand.vmem [shape: f32[1,32], index: 2, kind: input, shape index: {}]
  %s3 = inlined_call_operand.vmem [shape: f32[1,32], index: 3, kind: input, shape index: {}]
  %s4 = inlined_call_operand.hbm [shape: f32[16,32], index: 4, kind: output, shape index: {}]
  %s5 = sld [smem:[#allocation0]]
  $region57: #{tpu_custom_call.1} parent=0
    _
  %s7 = ssub.s32 1, %s5
  %s8 = scalar_select 0, %s7, %s5
  $region1: #{tpu_custom_call.1} parent=0
    #allocation2 [shape = 'u8[8192]{0}', space=vmem, size = 0x2000, scoped, tag = 'input window, operand 0']
    #allocation3 [shape = 's32[2]{0}', space=sflag, size = 0x8, scoped, tag = 'scoped memory for tpu_custom_call.1']
    #allocation4 [shape = 's32[2]{0}', space=sflag, size = 0x8, scoped, tag = 'scoped memory for tpu_custom_call.1']
    #allocation5 [shape = 'u8[8192]{0}', space=vmem, size = 0x2000, scoped, tag = 'input window, operand 1']
    #allocation6 [shape = 's32[2]{0}', space=sflag, size = 0x8, scoped, tag = 'scoped memory for tpu_custom_call.1']
    #allocation7 [shape = 'u8[8192]{0}', space=vmem, size = 0x2000, scoped, tag = 'output window, operand 0']
    %9 = vsyncpa [#allocation3], 0
    %s10 = scalar_lea.sflag [#allocation3], 1
    %11 = vsyncpa %s10, 0
    %12 = vsyncpa [#allocation6], 0
    %s13 = scalar_lea.sflag [#allocation6], 1
    %14 = vsyncpa %s13, 0
    %15 = vsyncpa [#allocation4], 0
    %s16 = scalar_lea.sflag [#allocation4], 1
    %17 = vsyncpa %s16, 0
    loop: start=0, step=1, limit=4
    $region2: #{tpu_custom_call.1} parent=1 // loop_pre_header
      _
    $region3: #{tpu_custom_call.1} parent=1 // loop_header
      %s19 = sphi 0, %s23
      %p20 = scmp.ge.s32.totalorder %s19, 4
      %s29 = sphi 0, %s31
      %s32 = sphi 0, %s29
      %s33 = sphi 0, %s32
      %s49 = sphi 0, %s33
      %s55 = sphi 0, %s57
      %s58 = sphi 0, %s55
      %s59 = sphi 0, %s58
      %s75 = sphi 0, %s59
      %s79 = sphi 0, %s79
      %s81 = sphi 0, %s79
      %s82 = sphi 0, %s81
      %s96 = sphi 0, %s82
      %s100 = sphi 0, %s100
      %s102 = sphi 0, %s100
      %s103 = sphi 0, %s102
      %s117 = sphi 0, %s103
      %s123 = sphi 0, %s125
      %s126 = sphi 0, %s123
      %s127 = sphi 0, %s126
      %s143 = sphi 0, %s127
    $region4: #{tpu_custom_call.1} parent=1 // loop_header_branch
      %22 = sbr.rel (%p20) target = $region8
    $region5: #{tpu_custom_call.1} parent=1 // loop_body
      %s24 = ssub.s32 %s19, 1
      %s25 = ssub.s32 %s19, 2
      %s26 = sadd.s32 %s19, 1
      %s27 = ssub.s32 %s19, %s26
      %p28 = scmp.eq.s32.totalorder %s27, 0
      %s30 = sadd.s32 %s29, 1
      %s31 = scalar_select %p28, %s29, %s30
      %p34 = pneg %p28
      %p35 = scmp.eq.s32.totalorder %s19, 1
      %p36 = por %p34, %p35
      %p37 = scmp.ne.s32.totalorder %s29, %s32
      %p38 = scmp.eq.s32.totalorder %s19, 0
      %p39 = por %p37, %p38
      %p40 = scmp.ne.s32.totalorder %s29, %s32
      %p41 = scmp.eq.s32.totalorder %s24, 1
      %p42 = por %p40, %p41
      %p43 = scmp.ne.s32.totalorder %s32, %s33
      %p44 = scmp.eq.s32.totalorder %s24, 0
      %p45 = por %p43, %p44
      %p46 = scmp.ne.s32.totalorder %s32, %s33
      %p47 = scmp.eq.s32.totalorder %s25, 1
      %p48 = por %p46, %p47
      %p50 = scmp.ne.s32.totalorder %s33, %s49
      %p51 = scmp.eq.s32.totalorder %s25, 0
      %p52 = por %p50, %p51
      %s53 = ssub.s32 %s19, %s26
      %p54 = scmp.eq.s32.totalorder %s53, 0
      %s56 = sadd.s32 %s55, 1
      %s57 = scalar_select %p54, %s55, %s56
      %p60 = pneg %p54
      %p61 = scmp.eq.s32.totalorder %s19, 1
      %p62 = por %p60, %p61
      %p63 = scmp.ne.s32.totalorder %s55, %s58
      %p64 = scmp.eq.s32.totalorder %s19, 0
      %p65 = por %p63, %p64
      %p66 = scmp.ne.s32.totalorder %s55, %s58
      %p67 = scmp.eq.s32.totalorder %s24, 1
      %p68 = por %p66, %p67
      %p69 = scmp.ne.s32.totalorder %s58, %s59
      %p70 = scmp.eq.s32.totalorder %s24, 0
      %p71 = por %p69, %p70
      %p72 = scmp.ne.s32.totalorder %s58, %s59
      %p73 = scmp.eq.s32.totalorder %s25, 1
      %p74 = por %p72, %p73
      %p76 = scmp.ne.s32.totalorder %s59, %s75
      %p77 = scmp.eq.s32.totalorder %s25, 0
      %p78 = por %p76, %p77
      %s80 = sadd.s32 %s79, 1
      %p83 = scmp.eq.s32.totalorder %s19, 1
      %p84 = scmp.ne.s32.totalorder %s79, %s81
      %p85 = scmp.eq.s32.totalorder %s19, 0
      %p86 = por %p84, %p85
      %p87 = scmp.ne.s32.totalorder %s79, %s81
      %p88 = scmp.eq.s32.totalorder %s24, 1
      %p89 = por %p87, %p88
      %p90 = scmp.ne.s32.totalorder %s81, %s82
      %p91 = scmp.eq.s32.totalorder %s24, 0
      %p92 = por %p90, %p91
      %p93 = scmp.ne.s32.totalorder %s81, %s82
      %p94 = scmp.eq.s32.totalorder %s25, 1
      %p95 = por %p93, %p94
      %p97 = scmp.ne.s32.totalorder %s82, %s96
      %p98 = scmp.eq.s32.totalorder %s25, 0
      %p99 = por %p97, %p98
      %s101 = sadd.s32 %s100, 1
      %p104 = scmp.eq.s32.totalorder %s19, 1
      %p105 = scmp.ne.s32.totalorder %s100, %s102
      %p106 = scmp.eq.s32.totalorder %s19, 0
      %p107 = por %p105, %p106
      %p108 = scmp.ne.s32.totalorder %s100, %s102
      %p109 = scmp.eq.s32.totalorder %s24, 1
      %p110 = por %p108, %p109
      %p111 = scmp.ne.s32.totalorder %s102, %s103
      %p112 = scmp.eq.s32.totalorder %s24, 0
      %p113 = por %p111, %p112
      %p114 = scmp.ne.s32.totalorder %s102, %s103
      %p115 = scmp.eq.s32.totalorder %s25, 1
      %p116 = por %p114, %p115
      %p118 = scmp.ne.s32.totalorder %s103, %s117
      %p119 = scmp.eq.s32.totalorder %s25, 0
      %p120 = por %p118, %p119
      %s121 = ssub.s32 %s19, %s26
      %p122 = scmp.eq.s32.totalorder %s121, 0
      %s124 = sadd.s32 %s123, 1
      %s125 = scalar_select %p122, %s123, %s124
      %p128 = pneg %p122
      %p129 = scmp.eq.s32.totalorder %s19, 1
      %p130 = por %p128, %p129
      %p131 = scmp.ne.s32.totalorder %s123, %s126
      %p132 = scmp.eq.s32.totalorder %s19, 0
      %p133 = por %p131, %p132
      %p134 = scmp.ne.s32.totalorder %s123, %s126
      %p135 = scmp.eq.s32.totalorder %s24, 1
      %p136 = por %p134, %p135
      %p137 = scmp.ne.s32.totalorder %s126, %s127
      %p138 = scmp.eq.s32.totalorder %s24, 0
      %p139 = por %p137, %p138
      %p140 = scmp.ne.s32.totalorder %s126, %s127
      %p141 = scmp.eq.s32.totalorder %s25, 1
      %p142 = por %p140, %p141
      %p144 = scmp.ne.s32.totalorder %s127, %s143
      %p145 = scmp.eq.s32.totalorder %s25, 0
      %p146 = por %p144, %p145
      %p147 = scmp.le.s32.totalorder 1, %s19
      %p148 = scmp.lt.s32.totalorder %s19, 3
      %p149 = pnand %p147, %p148
      %p150 = pneg %p149
      // Predicated region
      $region9: #{tpu_custom_call.1} parent=5 // pred_check
        _
      $region10: #{tpu_custom_call.1} parent=5 // pred_check_branch
        %152 = sbr.rel (%p149) target = $region12
      $region11: #{tpu_custom_call.1} parent=5 // pred_region
        %s153 = ssub.s32 %s19, 1
        // Predicated region
        $region13: #{tpu_custom_call.1} parent=11 // pred_check
          %p154 = pneg %p92
        $region14: #{tpu_custom_call.1} parent=11 // pred_check_branch
          %156 = sbr.rel (%p154) target = $region16
        $region15: #{tpu_custom_call.1} parent=11 // pred_region
          _
        $region16: #{tpu_custom_call.1} parent=11 // pred_fallthru
          _
        // Predicated region
        $region17: #{tpu_custom_call.1} parent=11 // pred_check
          %p157 = pneg %p113
        $region18: #{tpu_custom_call.1} parent=11 // pred_check_branch
          %159 = sbr.rel (%p157) target = $region20
        $region19: #{tpu_custom_call.1} parent=11 // pred_region
          _
        $region20: #{tpu_custom_call.1} parent=11 // pred_fallthru
          _
      $region12: #{tpu_custom_call.1} parent=5 // pred_fallthru
        _
      %p160 = scmp.lt.s32.totalorder %s19, 2
      // Predicated region
      $region21: #{tpu_custom_call.1} parent=5 // pred_check
        %p161 = pneg %p160
      $region22: #{tpu_custom_call.1} parent=5 // pred_check_branch
        %163 = sbr.rel (%p161) target = $region24
      $region23: #{tpu_custom_call.1} parent=5 // pred_region
        // Predicated region
        $region25: #{tpu_custom_call.1} parent=23 // pred_check
          %p164 = pneg %p39
        $region26: #{tpu_custom_call.1} parent=23 // pred_check_branch
          %166 = sbr.rel (%p164) target = $region28
        $region27: #{tpu_custom_call.1} parent=23 // pred_region
          %s167 = sand.u32 %s29, 1
          %s168 = scalar_lea.sflag [#allocation3], %s167
          %s169 = sand.u32 %s29, 1
          %s170 = smul.addr %s169, 8
          %s171 = scalar_lea.vmem [#allocation2], %s170
          %173 = vsyncadd %s168, 0
          %s174 = smul.addr %s19, 8
          %s175 = scalar_lea.hbm %s0, %s174
          %s177 = sshll.u32 %s175, 4
          %s178 = int_to_ptr.hbm [resolvable:$true] %s177
          %s179 = sshll.u32 %s171, 4
          %s180 = int_to_ptr.vmem [resolvable:$true] %s179
          %182 = dma.hbm_to_vmem [thread:$0]  %s178, 128, %s180, %s168
        $region28: #{tpu_custom_call.1} parent=23 // pred_fallthru
          _
        // Predicated region
        $region29: #{tpu_custom_call.1} parent=23 // pred_check
          %p183 = pneg %p65
        $region30: #{tpu_custom_call.1} parent=23 // pred_check_branch
          %185 = sbr.rel (%p183) target = $region32
        $region31: #{tpu_custom_call.1} parent=23 // pred_region
          %s186 = sand.u32 %s55, 1
          %s187 = scalar_lea.sflag [#allocation6], %s186
          %s188 = sand.u32 %s55, 1
          %s189 = smul.addr %s188, 8
          %s190 = scalar_lea.vmem [#allocation5], %s189
          %192 = vsyncadd %s187, 0
          %s193 = smul.addr %s19, 8
          %s194 = scalar_lea.hbm %s1, %s193
          %s196 = sshll.u32 %s194, 4
          %s197 = int_to_ptr.hbm [resolvable:$true] %s196
          %s198 = sshll.u32 %s190, 4
          %s199 = int_to_ptr.vmem [resolvable:$true] %s198
          %201 = dma.hbm_to_vmem [thread:$0]  %s197, 128, %s199, %s187
        $region32: #{tpu_custom_call.1} parent=23 // pred_fallthru
          _
      $region24: #{tpu_custom_call.1} parent=5 // pred_fallthru
        _
      %p202 = scmp.le.s32.totalorder 1, %s19
      %p203 = scmp.lt.s32.totalorder %s19, 3
      %p204 = pnand %p202, %p203
      %p205 = pneg %p204
      // Predicated region
      $region33: #{tpu_custom_call.1} parent=5 // pred_check
        _
      $region34: #{tpu_custom_call.1} parent=5 // pred_check_branch
        %207 = sbr.rel (%p204) target = $region36
      $region35: #{tpu_custom_call.1} parent=5 // pred_region
        %s208 = ssub.s32 %s19, 1
        %s209 = sand.u32 %s32, 1
        %s210 = scalar_lea.sflag [#allocation3], %s209
        %s211 = sand.u32 %s32, 1
        %s212 = smul.addr %s211, 8
        %s213 = scalar_lea.vmem [#allocation2], %s212
        // Predicated region
        $region37: #{tpu_custom_call.1} parent=35 // pred_check
          %p214 = pneg %p45
        $region38: #{tpu_custom_call.1} parent=35 // pred_check_branch
          %216 = sbr.rel (%p214) target = $region40
        $region39: #{tpu_custom_call.1} parent=35 // pred_region
          %218 = dma.done %s210, 128
        $region40: #{tpu_custom_call.1} parent=35 // pred_fallthru
          _
        %s219 = sand.u32 %s58, 1
        %s220 = scalar_lea.sflag [#allocation6], %s219
        %s221 = sand.u32 %s58, 1
        %s222 = smul.addr %s221, 8
        %s223 = scalar_lea.vmem [#allocation5], %s222
        // Predicated region
        $region41: #{tpu_custom_call.1} parent=35 // pred_check
          %p224 = pneg %p71
        $region42: #{tpu_custom_call.1} parent=35 // pred_check_branch
          %226 = sbr.rel (%p224) target = $region44
        $region43: #{tpu_custom_call.1} parent=35 // pred_region
          %228 = dma.done %s220, 128
        $region44: #{tpu_custom_call.1} parent=35 // pred_fallthru
          _
        %s229 = sand.u32 %s32, 1
        %s230 = scalar_lea.sflag [#allocation3], %s229
        %s231 = sand.u32 %s32, 1
        %s232 = smul.addr %s231, 8
        %s233 = scalar_lea.vmem [#allocation2], %s232
        %p234 = pneg %p45
        %p235 = pneg %p42
        %s236 = sand.u32 %s58, 1
        %s237 = scalar_lea.sflag [#allocation6], %s236
        %s238 = sand.u32 %s58, 1
        %s239 = smul.addr %s238, 8
        %s240 = scalar_lea.vmem [#allocation5], %s239
        %p241 = pneg %p71
        %p242 = pneg %p68
        %p243 = pneg %p92
        %p244 = pneg %p89
        %p245 = pneg %p113
        %p246 = pneg %p110
        %p247 = pneg %p139
        %p248 = pneg %p136
        %s249 = sand.u32 %s126, 1
        %s250 = scalar_lea.sflag [#allocation4], %s249
        %s251 = sand.u32 %s126, 1
        %s252 = smul.addr %s251, 8
        %s253 = scalar_lea.vmem [#allocation7], %s252
        %v254 = vld [vmem:[%s223] sm:$0xff]
        %vm255 = vcmask 261120
        %v256 = vsel %vm255, %v254, 0.0
        %257 = vadd.xlane.f32.xlu0 %v256
        %v258 = vpop.xlane.xlu0 %257
        %v259 = vrcp.pop 32.0
        %v260 = vmul.f32 32.0, %v259
        %v261 = vsub.f32 1.0, %v260
        %v262 = vmul.f32 %v259, %v261
        %v263 = vadd.f32 %v259, %v262
        %vm264 = vweird.f32 %v259
        %v265 = vsel %vm264, %v259, %v263
        %v266 = vmul.f32 %v258, %v265
        %v267 = vsub.f32 %v254, %v266
        %v268 = vmul.f32 %v267, %v267
        %v269 = vsel %vm255, %v268, 0.0
        %270 = vadd.xlane.f32.xlu0 %v269
        %v271 = vpop.xlane.xlu0 %270
        %v272 = vmul.f32 %v271, %v265
        %v273 = vadd.f32 %v272, 1e-05
        %v274 = vrsqrt.pop %v273
        %v275 = vmul.f32 %v274, %v273
        %v276 = vmul.f32 %v275, %v274
        %v277 = vmul.f32 0.5, %v276
        %v278 = vsub.f32 1.5, %v277
        %v279 = vmul.f32 %v274, %v278
        %vm280 = vweird.f32 %v273
        %vm281 = vweird.f32 %v274
        %vm282 = vmor %vm280, %vm281
        %v283 = vsel %vm282, %v274, %v279
        %v284 = vld [vmem:[%s2] sm:$0x1]
        %v285 = vld [vmem:[%s3] sm:$0x1]
        %v286 = vmul.f32 %v267, %v283
        %v288 = vperm.slane %v284, 0
        %v290 = vmul.f32 %v286, %v288
        %v292 = vperm.slane %v285, 0
        %v294 = vadd.f32 %v290, %v292
        %v295 = vld [vmem:[%s213] sm:$0xff]
        %v296 = vadd.f32 %v295, %v294
        %297 = vst.msk [vmem:[%s253] sm:$0xff] %vm255, %v296
        %s298 = sand.u32 %s126, 1
        %s299 = scalar_lea.sflag [#allocation4], %s298
        %s300 = sand.u32 %s126, 1
        %s301 = smul.addr %s300, 8
        %s302 = scalar_lea.vmem [#allocation7], %s301
        // Predicated region
        $region45: #{tpu_custom_call.1} parent=35 // pred_check
          %p303 = pneg %p136
        $region46: #{tpu_custom_call.1} parent=35 // pred_check_branch
          %305 = sbr.rel (%p303) target = $region48
        $region47: #{tpu_custom_call.1} parent=35 // pred_region
          %307 = vsyncadd %s299, 0
          %s308 = smul.addr %s24, 8
          %s309 = scalar_lea.hbm %s4, %s308
          %s311 = sshll.u32 %s302, 4
          %s312 = int_to_ptr.vmem [resolvable:$true] %s311
          %s313 = sshll.u32 %s309, 4
          %s314 = int_to_ptr.hbm [resolvable:$true] %s313
          %316 = dma.vmem_to_hbm [thread:$0]  %s312, 128, %s314, %s299
        $region48: #{tpu_custom_call.1} parent=35 // pred_fallthru
          _
      $region36: #{tpu_custom_call.1} parent=5 // pred_fallthru
        _
      %p317 = scmp.le.s32.totalorder 2, %s19
      // Predicated region
      $region49: #{tpu_custom_call.1} parent=5 // pred_check
        %p318 = pneg %p317
      $region50: #{tpu_custom_call.1} parent=5 // pred_check_branch
        %320 = sbr.rel (%p318) target = $region52
      $region51: #{tpu_custom_call.1} parent=5 // pred_region
        %s321 = ssub.s32 %s19, 2
        // Predicated region
        $region53: #{tpu_custom_call.1} parent=51 // pred_check
          %p322 = pneg %p142
        $region54: #{tpu_custom_call.1} parent=51 // pred_check_branch
          %324 = sbr.rel (%p322) target = $region56
        $region55: #{tpu_custom_call.1} parent=51 // pred_region
          %s325 = sand.u32 %s127, 1
          %s326 = scalar_lea.sflag [#allocation4], %s325
          %s327 = sand.u32 %s127, 1
          %s328 = smul.addr %s327, 8
          %s329 = scalar_lea.vmem [#allocation7], %s328
          %331 = dma.done %s326, 128
        $region56: #{tpu_custom_call.1} parent=51 // pred_fallthru
          _
      $region52: #{tpu_custom_call.1} parent=5 // pred_fallthru
        _
    $region6: #{tpu_custom_call.1} parent=1 // loop_footer
      %s23 = sadd.s32 1, %s19
    $region7: #{tpu_custom_call.1} parent=1 // loop_footer_branch
      %18 = sbr.rel target = $region3
    $region8: #{tpu_custom_call.1} parent=1 // loop_exit
      _
    %332 = vsyncpa [#allocation3], 1
    %s333 = scalar_lea.sflag [#allocation3], 1
    %334 = vsyncpa %s333, 1
    %335 = vsyncpa [#allocation6], 1
    %s336 = scalar_lea.sflag [#allocation6], 1
    %337 = vsyncpa %s336, 1
    %338 = vsyncpa [#allocation4], 1
    %s339 = scalar_lea.sflag [#allocation4], 1
    %340 = vsyncpa %s339, 1

</llo_original>
